<compile_context>
chip_gen: v7x
topology: tpu7x:2x2x1
jax: 0.10.0
libtpu: 0.0.40
codegen_flags: <defaults>
</compile_context>

<pallas_src>
import functools

import jax
import jax.numpy as jnp
from jax.experimental import pallas as pl
from jax.experimental.pallas import tpu as pltpu


def _make_kernel(n_layers, d_t):
    """refs = (t_smem, t_alignT, yT, XT, w0t, w0y, w0x, b0, w1, b1, ..., out)."""

    def kernel(t_ref, ta_ref, y_ref, x_ref, *rest):
        out_ref = rest[-1]
        params = rest[:-1]

        t = t_ref[0, 0]                      # scalar from SMEM
        ta = ta_ref[...]                     # (d_t, TN)
        teff = t * ta                        # t * t_align, computed in-kernel

        w0t = params[0][...]                 # (H0, d_t)
        w0y = params[1][...]                 # (H0, d_y)
        w0x = params[2][...]                 # (H0, d_X)
        b0 = params[3][...]                  # (H0, 1)

        # First Linear applied to the implicit hstack([t*t_align, y, X]):
        #   W0 @ aug^T  ==  W0_t @ teff + W0_y @ y^T + W0_x @ X^T
        if d_t == 1:
            h = w0t * teff                   # (H0,1)*(1,TN) outer product on VPU
        else:
            h = jnp.dot(w0t, teff, preferred_element_type=jnp.float32)
        h = (h
             + jnp.dot(w0y, y_ref[...], preferred_element_type=jnp.float32)
             + jnp.dot(w0x, x_ref[...], preferred_element_type=jnp.float32)
             + b0)

        # Remaining layers: Tanh then Linear (final Linear has no trailing Tanh).
        for l in range(1, n_layers):
            w = params[2 + 2 * l][...]       # (H_l, H_{l-1})
            b = params[3 + 2 * l][...]       # (H_l, 1)
            h = jnp.tanh(h)
            h = jnp.dot(w, h, preferred_element_type=jnp.float32) + b

        out_ref[...] = (ta * h).astype(out_ref.dtype)   # final t_align scaling

    return kernel


def init_params(key, config):
    """Xavier-normal weights (torch (out,in) layout), zero biases (out,1)."""
    params = []
    for l in range(len(config) - 1):
        in_dim, out_dim = config[l], config[l + 1]
        key, sub = jax.random.split(key)
        std = (2.0 / (in_dim + out_dim)) ** 0.5
        w = std * jax.random.normal(sub, (out_dim, in_dim), dtype=jnp.float32)
        b = jnp.zeros((out_dim, 1), dtype=jnp.float32)
        params.append((w, b))
    return params


@functools.partial(jax.jit, static_argnames=("max_tn",))
def odefunc_forward(t, y, X, t_align, params, max_tn=8192):
    """JAX/Pallas equivalent of ODEFunc.forward(t, y, X, t_align)."""
    N, d_y = y.shape
    d_x = X.shape[1]
    d_t = t_align.shape[1]
    n_layers = len(params)
    d_out = params[-1][0].shape[0]
    assert d_t == 1 or d_t == d_out, "t_align width must broadcast against the output"

    f32 = jnp.float32
    # Layout plumbing: features on sublanes, N on lanes (lane-dense).
    yT = jnp.asarray(y, f32).T               # (d_y, N)
    xT = jnp.asarray(X, f32).T               # (d_x, N)
    taT = jnp.asarray(t_align, f32).T        # (d_t, N)

    # Column tile: multiple of 128 lanes; large enough to amortize per-step
    # overhead, small enough for v7x's 64 MiB VMEM; prefer >= 2 grid steps so
    # both v7x TensorCores get work.
    lanes = 128
    n_lane = ((N + lanes - 1) // lanes) * lanes
    tn_cap = n_lane // 2 if n_lane >= 2 * lanes else n_lane
    tn = max(lanes, (min(max_tn, tn_cap) // lanes) * lanes)
    padded_n = ((N + tn - 1) // tn) * tn
    pad = padded_n - N
    if pad:
        yT = jnp.pad(yT, ((0, 0), (0, pad)))
        xT = jnp.pad(xT, ((0, 0), (0, pad)))
        taT = jnp.pad(taT, ((0, 0), (0, pad)))

    # Split the first-layer weight into the [t | y | X] column blocks of the
    # hstack (done once in the wrapper; no in-kernel lane slicing needed).
    w0, b0 = params[0]
    flat_params = [w0[:, :d_t], w0[:, d_t:d_t + d_y], w0[:, d_t + d_y:], b0]
    for (w, b) in params[1:]:
        flat_params += [w, b]

    t_arr = jnp.full((1, 1), t, f32)

    grid = (padded_n // tn,)

    def col_spec(d):
        return pl.BlockSpec((d, tn), lambda i: (0, i))

    # Constant block index keeps the tiny weight/bias tiles VMEM-resident.
    param_specs = [pl.BlockSpec(p.shape, lambda i: (0, 0)) for p in flat_params]

    out_t = pl.pallas_call(
        _make_kernel(n_layers, d_t),
        out_shape=jax.ShapeDtypeStruct((d_out, padded_n), f32),
        grid=grid,
        in_specs=[pl.BlockSpec(memory_space=pltpu.MemorySpace.SMEM),  # t scalar
                  col_spec(d_t), col_spec(d_y), col_spec(d_x)] + param_specs,
        out_specs=col_spec(d_out),
        compiler_params=pltpu.CompilerParams(
            dimension_semantics=("parallel",),
        ),
    )(t_arr, taT, yT, xT, *flat_params)

    return out_t[:, :N].T


def _reference_forward(t, y, X, t_align, params):
    """Pure-JAX reference mirroring the PyTorch module."""
    t = jnp.asarray(t, jnp.float32)
    aug = jnp.concatenate([t * t_align, y, X], axis=1)
    h = aug
    n_layers = len(params)
    for l, (w, b) in enumerate(params):
        h = h @ w.T + b[:, 0]
        if l < n_layers - 1:
            h = jnp.tanh(h)
    return t_align * h


if __name__ == "__main__":
    key = jax.random.PRNGKey(0)
    k_p, k_y, k_x, k_a = jax.random.split(key, 4)

    # config[0] = d_t + d_y + d_X (width of hstack([t*t_align, y, X]))
    d_t, d_y, d_x, hidden, d_out = 1, 16, 8, 32, 16
    config = [d_t + d_y + d_x, hidden, hidden, d_out]
    params = init_params(k_p, config)

    N = 200   # not a multiple of 128 -> exercises padding + a 2-step grid
    y = jax.random.normal(k_y, (N, d_y), dtype=jnp.float32)
    X = jax.random.normal(k_x, (N, d_x), dtype=jnp.float32)
    t_align = jax.random.uniform(k_a, (N, d_t), dtype=jnp.float32)
    t = 0.37

    out = odefunc_forward(t, y, X, t_align, params)
    out = jax.block_until_ready(out)
    ref = _reference_forward(t, y, X, t_align, params)

    assert out.shape == (N, d_out)
    max_err = float(jnp.max(jnp.abs(out - ref)))
    assert jnp.allclose(out, ref, atol=1e-4, rtol=1e-4), f"max_err={max_err}"

    print("KERNEL_OK")
</pallas_src>

<mosaic_0001>
module attributes {stable_mosaic.version = 11 : i64} {
  func.func @kernel(%arg0: i32, %arg1: memref<1x1xf32, #tpu.memory_space<smem>>, %arg2: memref<1x128xf32, #tpu.memory_space<vmem>>, %arg3: memref<16x128xf32, #tpu.memory_space<vmem>>, %arg4: memref<8x128xf32, #tpu.memory_space<vmem>>, %arg5: memref<32x1xf32, #tpu.memory_space<vmem>>, %arg6: memref<32x16xf32, #tpu.memory_space<vmem>>, %arg7: memref<32x8xf32, #tpu.memory_space<vmem>>, %arg8: memref<32x1xf32, #tpu.memory_space<vmem>>, %arg9: memref<32x32xf32, #tpu.memory_space<vmem>>, %arg10: memref<32x1xf32, #tpu.memory_space<vmem>>, %arg11: memref<16x32xf32, #tpu.memory_space<vmem>>, %arg12: memref<16x1xf32, #tpu.memory_space<vmem>>, %arg13: memref<16x128xf32, #tpu.memory_space<vmem>>) attributes {dimension_semantics = [#tpu.dimension_semantics<parallel>], iteration_bounds = array<i64: 2>, scalar_prefetch = 0 : i64, scratch_operands = 0 : i64, tpu.core_type = #tpu.core_type<tc>, window_params = [{transform_indices = @transform_0, window_bounds = array<i64: 1, 1>}, {transform_indices = @transform_1, window_bounds = array<i64: 1, 128>}, {transform_indices = @transform_2, window_bounds = array<i64: 16, 128>}, {transform_indices = @transform_3, window_bounds = array<i64: 8, 128>}, {pipeline_mode = #tpu.pipeline_mode<synchronous>, transform_indices = @transform_4, window_bounds = array<i64: 32, 1>}, {pipeline_mode = #tpu.pipeline_mode<synchronous>, transform_indices = @transform_5, window_bounds = array<i64: 32, 16>}, {pipeline_mode = #tpu.pipeline_mode<synchronous>, transform_indices = @transform_6, window_bounds = array<i64: 32, 8>}, {pipeline_mode = #tpu.pipeline_mode<synchronous>, transform_indices = @transform_7, window_bounds = array<i64: 32, 1>}, {pipeline_mode = #tpu.pipeline_mode<synchronous>, transform_indices = @transform_8, window_bounds = array<i64: 32, 32>}, {pipeline_mode = #tpu.pipeline_mode<synchronous>, transform_indices = @transform_9, window_bounds = array<i64: 32, 1>}, {pipeline_mode = #tpu.pipeline_mode<synchronous>, transform_indices = @transform_10, window_bounds = array<i64: 16, 32>}, {pipeline_mode = #tpu.pipeline_mode<synchronous>, transform_indices = @transform_11, window_bounds = array<i64: 16, 1>}, {transform_indices = @transform_12, window_bounds = array<i64: 16, 128>}]} {
    %c0 = arith.constant 0 : index
    %c0_0 = arith.constant 0 : index
    %0 = memref.load %arg1[%c0, %c0_0] : memref<1x1xf32, #tpu.memory_space<smem>>
    %c0_1 = arith.constant 0 : index
    %c0_2 = arith.constant 0 : index
    %1 = vector.load %arg2[%c0_1, %c0_2] : memref<1x128xf32, #tpu.memory_space<vmem>>, vector<1x128xf32>
    %2 = vector.broadcast %0 : f32 to vector<1x128xf32>
    %3 = arith.mulf %2, %1 : vector<1x128xf32>
    %c0_3 = arith.constant 0 : index
    %c0_4 = arith.constant 0 : index
    %4 = vector.load %arg5[%c0_3, %c0_4] : memref<32x1xf32, #tpu.memory_space<vmem>>, vector<32x1xf32>
    %c0_5 = arith.constant 0 : index
    %c0_6 = arith.constant 0 : index
    %5 = vector.load %arg6[%c0_5, %c0_6] : memref<32x16xf32, #tpu.memory_space<vmem>>, vector<32x16xf32>
    %c0_7 = arith.constant 0 : index
    %c0_8 = arith.constant 0 : index
    %6 = vector.load %arg7[%c0_7, %c0_8] : memref<32x8xf32, #tpu.memory_space<vmem>>, vector<32x8xf32>
    %c0_9 = arith.constant 0 : index
    %c0_10 = arith.constant 0 : index
    %7 = vector.load %arg8[%c0_9, %c0_10] : memref<32x1xf32, #tpu.memory_space<vmem>>, vector<32x1xf32>
    %8 = vector.broadcast %4 : vector<32x1xf32> to vector<32x128xf32>
    %9 = vector.broadcast %3 : vector<1x128xf32> to vector<32x128xf32>
    %10 = arith.mulf %8, %9 : vector<32x128xf32>
    %c0_11 = arith.constant 0 : index
    %c0_12 = arith.constant 0 : index
    %11 = vector.load %arg3[%c0_11, %c0_12] : memref<16x128xf32, #tpu.memory_space<vmem>>, vector<16x128xf32>
    %cst = arith.constant dense<0.000000e+00> : vector<32x128xf32>
    %12 = tpu.matmul %5, %11, %cst {dimension_numbers = #tpu.dot_dimension_numbers<[1], [0], [0], [1], [0, 0, 1, 1], [], []>} : vector<32x16xf32>, vector<16x128xf32>, vector<32x128xf32> -> vector<32x128xf32>
    %13 = arith.addf %10, %12 : vector<32x128xf32>
    %c0_13 = arith.constant 0 : index
    %c0_14 = arith.constant 0 : index
    %14 = vector.load %arg4[%c0_13, %c0_14] : memref<8x128xf32, #tpu.memory_space<vmem>>, vector<8x128xf32>
    %cst_15 = arith.constant dense<0.000000e+00> : vector<32x128xf32>
    %15 = tpu.matmul %6, %14, %cst_15 {dimension_numbers = #tpu.dot_dimension_numbers<[1], [0], [0], [1], [0, 0, 1, 1], [], []>} : vector<32x8xf32>, vector<8x128xf32>, vector<32x128xf32> -> vector<32x128xf32>
    %16 = arith.addf %13, %15 : vector<32x128xf32>
    %17 = vector.broadcast %7 : vector<32x1xf32> to vector<32x128xf32>
    %18 = arith.addf %16, %17 : vector<32x128xf32>
    %c0_16 = arith.constant 0 : index
    %c0_17 = arith.constant 0 : index
    %19 = vector.load %arg9[%c0_16, %c0_17] : memref<32x32xf32, #tpu.memory_space<vmem>>, vector<32x32xf32>
    %c0_18 = arith.constant 0 : index
    %c0_19 = arith.constant 0 : index
    %20 = vector.load %arg10[%c0_18, %c0_19] : memref<32x1xf32, #tpu.memory_space<vmem>>, vector<32x1xf32>
    %21 = math.tanh %18 : vector<32x128xf32>
    %cst_20 = arith.constant dense<0.000000e+00> : vector<32x128xf32>
    %22 = tpu.matmul %19, %21, %cst_20 {dimension_numbers = #tpu.dot_dimension_numbers<[1], [0], [0], [1], [0, 0, 1, 1], [], []>} : vector<32x32xf32>, vector<32x128xf32>, vector<32x128xf32> -> vector<32x128xf32>
    %23 = vector.broadcast %20 : vector<32x1xf32> to vector<32x128xf32>
    %24 = arith.addf %22, %23 : vector<32x128xf32>
    %c0_21 = arith.constant 0 : index
    %c0_22 = arith.constant 0 : index
    %25 = vector.load %arg11[%c0_21, %c0_22] : memref<16x32xf32, #tpu.memory_space<vmem>>, vector<16x32xf32>
    %c0_23 = arith.constant 0 : index
    %c0_24 = arith.constant 0 : index
    %26 = vector.load %arg12[%c0_23, %c0_24] : memref<16x1xf32, #tpu.memory_space<vmem>>, vector<16x1xf32>
    %27 = math.tanh %24 : vector<32x128xf32>
    %cst_25 = arith.constant dense<0.000000e+00> : vector<16x128xf32>
    %28 = tpu.matmul %25, %27, %cst_25 {dimension_numbers = #tpu.dot_dimension_numbers<[1], [0], [0], [1], [0, 0, 1, 1], [], []>} : vector<16x32xf32>, vector<32x128xf32>, vector<16x128xf32> -> vector<16x128xf32>
    %29 = vector.broadcast %26 : vector<16x1xf32> to vector<16x128xf32>
    %30 = arith.addf %28, %29 : vector<16x128xf32>
    %31 = vector.broadcast %1 : vector<1x128xf32> to vector<16x128xf32>
    %32 = arith.mulf %31, %30 : vector<16x128xf32>
    %c0_26 = arith.constant 0 : index
    %c0_27 = arith.constant 0 : index
    %33 = vector.load %arg13[%c0_26, %c0_27] : memref<16x128xf32, #tpu.memory_space<vmem>>, vector<16x128xf32>
    tpu.vector_store %arg13[%c0_26, %c0_27], %32 {strides = array<i32>} : memref<16x128xf32, #tpu.memory_space<vmem>>, vector<16x128xf32>,
    return
  }
  func.func @transform_0(%arg0: i32) -> (i32, i32) {
    %c0_i32 = arith.constant 0 : i32
    %c0_i32_0 = arith.constant 0 : i32
    %c0_i32_1 = arith.constant 0 : i32
    return %c0_i32, %c0_i32_0 : i32, i32
  }
  func.func @transform_1(%arg0: i32) -> (i32, i32) {
    %c0_i32 = arith.constant 0 : i32
    %c0_i32_0 = arith.constant 0 : i32
    return %c0_i32, %arg0 : i32, i32
  }
  func.func @transform_2(%arg0: i32) -> (i32, i32) {
    %c0_i32 = arith.constant 0 : i32
    %c0_i32_0 = arith.constant 0 : i32
    return %c0_i32, %arg0 : i32, i32
  }
  func.func @transform_3(%arg0: i32) -> (i32, i32) {
    %c0_i32 = arith.constant 0 : i32
    %c0_i32_0 = arith.constant 0 : i32
    return %c0_i32, %arg0 : i32, i32
  }
  func.func @transform_4(%arg0: i32) -> (i32, i32) {
    %c0_i32 = arith.constant 0 : i32
    %c0_i32_0 = arith.constant 0 : i32
    %c0_i32_1 = arith.constant 0 : i32
    return %c0_i32, %c0_i32_0 : i32, i32
  }
  func.func @transform_5(%arg0: i32) -> (i32, i32) {
    %c0_i32 = arith.constant 0 : i32
    %c0_i32_0 = arith.constant 0 : i32
    %c0_i32_1 = arith.constant 0 : i32
    return %c0_i32, %c0_i32_0 : i32, i32
  }
  func.func @transform_6(%arg0: i32) -> (i32, i32) {
    %c0_i32 = arith.constant 0 : i32
    %c0_i32_0 = arith.constant 0 : i32
    %c0_i32_1 = arith.constant 0 : i32
    return %c0_i32, %c0_i32_0 : i32, i32
  }
  func.func @transform_7(%arg0: i32) -> (i32, i32) {
    %c0_i32 = arith.constant 0 : i32
    %c0_i32_0 = arith.constant 0 : i32
    %c0_i32_1 = arith.constant 0 : i32
    return %c0_i32, %c0_i32_0 : i32, i32
  }
  func.func @transform_8(%arg0: i32) -> (i32, i32) {
    %c0_i32 = arith.constant 0 : i32
    %c0_i32_0 = arith.constant 0 : i32
    %c0_i32_1 = arith.constant 0 : i32
    return %c0_i32, %c0_i32_0 : i32, i32
  }
  func.func @transform_9(%arg0: i32) -> (i32, i32) {
    %c0_i32 = arith.constant 0 : i32
    %c0_i32_0 = arith.constant 0 : i32
    %c0_i32_1 = arith.constant 0 : i32
    return %c0_i32, %c0_i32_0 : i32, i32
  }
  func.func @transform_10(%arg0: i32) -> (i32, i32) {
    %c0_i32 = arith.constant 0 : i32
    %c0_i32_0 = arith.constant 0 : i32
    %c0_i32_1 = arith.constant 0 : i32
    return %c0_i32, %c0_i32_0 : i32, i32
  }
  func.func @transform_11(%arg0: i32) -> (i32, i32) {
    %c0_i32 = arith.constant 0 : i32
    %c0_i32_0 = arith.constant 0 : i32
    %c0_i32_1 = arith.constant 0 : i32
    return %c0_i32, %c0_i32_0 : i32, i32
  }
  func.func @transform_12(%arg0: i32) -> (i32, i32) {
    %c0_i32 = arith.constant 0 : i32
    %c0_i32_0 = arith.constant 0 : i32
    return %c0_i32, %arg0 : i32, i32
  }
}

</mosaic_0001>

<llo_original>
// kernel: odefunc_forward.1
$region0: #{odefunc_forward.1}
  #allocation0 [shape = 'u32[]', space=smem, size = 0x4, offset = 0x4, fixed_abs, tag = 'smem constant byte address 0x4 - core index']
  #allocation1 [shape = 'u32[144,128]{1,0:T(1,128)}', space=vmem, size = 0x12000, scoped, tag = 'internal scratch']
  #allocation2 [shape = 'f32[1,1]{1,0:T(1,128)S(6)}', space=smem, size = 0x200, scoped, tag = 'scoped memory for odefunc_forward.1']
  %s0 = inlined_call_operand.<no memory space> [shape: f32[1,1], index: 0, kind: input, shape index: {}]
  %s1 = inlined_call_operand.vmem [shape: f32[1,256], index: 1, kind: input, shape index: {}]
  %s2 = inlined_call_operand.vmem [shape: f32[16,256], index: 2, kind: input, shape index: {}]
  %s3 = inlined_call_operand.vmem [shape: f32[8,256], index: 3, kind: input, shape index: {}]
  %s4 = inlined_call_operand.vmem [shape: f32[32,1], index: 4, kind: input, shape index: {}]
  %s5 = inlined_call_operand.vmem [shape: f32[32,16], index: 5, kind: input, shape index: {}]
  %s6 = inlined_call_operand.vmem [shape: f32[32,8], index: 6, kind: input, shape index: {}]
  %s7 = inlined_call_operand.vmem [shape: f32[32,1], index: 7, kind: input, shape index: {}]
  %s8 = inlined_call_operand.vmem [shape: f32[32,32], index: 8, kind: input, shape index: {}]
  %s9 = inlined_call_operand.vmem [shape: f32[32,1], index: 9, kind: input, shape index: {}]
  %s10 = inlined_call_operand.vmem [shape: f32[16,32], index: 10, kind: input, shape index: {}]
  %s11 = inlined_call_operand.vmem [shape: f32[16,1], index: 11, kind: input, shape index: {}]
  %s12 = inlined_call_operand.vmem [shape: f32[16,256], index: 12, kind: output, shape index: {}]
  %s13 = sld [smem:[#allocation0]]
  $region153: #{odefunc_forward.1} parent=0
    _
  %s15 = ssub.s32 1, %s13
  %s16 = scalar_select 0, %s15, %s13
  %17 = sst [smem:[#allocation2]] %s0
  $region1: #{odefunc_forward.1} parent=0
    #allocation3 [shape = 'u8[16384]{0}', space=vmem, size = 0x4000, scoped, tag = 'input window, operand 2']
    #allocation4 [shape = 'u8[16384]{0}', space=vmem, size = 0x4000, scoped, tag = 'output window, operand 0']
    loop: start=0, step=1, limit=4
    $region2: #{odefunc_forward.1} parent=1 // loop_pre_header
      _
    $region3: #{odefunc_forward.1} parent=1 // loop_header
      %s19 = sphi 0, %s23
      %p20 = scmp.ge.s32.totalorder %s19, 4
      %s27 = sphi 0, %s27
      %s29 = sphi 0, %s27
      %s30 = sphi 0, %s29
      %s44 = sphi 0, %s30
      %s50 = sphi 0, %s52
      %s53 = sphi 0, %s50
      %s54 = sphi 0, %s53
      %s70 = sphi 0, %s54
      %s76 = sphi 0, %s78
      %s79 = sphi 0, %s76
      %s80 = sphi 0, %s79
      %s96 = sphi 0, %s80
      %s102 = sphi 0, %s104
      %s105 = sphi 0, %s102
      %s106 = sphi 0, %s105
      %s122 = sphi 0, %s106
      %s126 = sphi 0, %s126
      %s128 = sphi 0, %s126
      %s129 = sphi 0, %s128
      %s143 = sphi 0, %s129
      %s147 = sphi 0, %s147
      %s149 = sphi 0, %s147
      %s150 = sphi 0, %s149
      %s164 = sphi 0, %s150
      %s168 = sphi 0, %s168
      %s170 = sphi 0, %s168
      %s171 = sphi 0, %s170
      %s185 = sphi 0, %s171
      %s189 = sphi 0, %s189
      %s191 = sphi 0, %s189
      %s192 = sphi 0, %s191
      %s206 = sphi 0, %s192
      %s210 = sphi 0, %s210
      %s212 = sphi 0, %s210
      %s213 = sphi 0, %s212
      %s227 = sphi 0, %s213
      %s231 = sphi 0, %s231
      %s233 = sphi 0, %s231
      %s234 = sphi 0, %s233
      %s248 = sphi 0, %s234
      %s252 = sphi 0, %s252
      %s254 = sphi 0, %s252
      %s255 = sphi 0, %s254
      %s269 = sphi 0, %s255
      %s273 = sphi 0, %s273
      %s275 = sphi 0, %s273
      %s276 = sphi 0, %s275
      %s290 = sphi 0, %s276
      %s296 = sphi 0, %s298
      %s299 = sphi 0, %s296
      %s300 = sphi 0, %s299
      %s316 = sphi 0, %s300
    $region4: #{odefunc_forward.1} parent=1 // loop_header_branch
      %22 = sbr.rel (%p20) target = $region8
    $region5: #{odefunc_forward.1} parent=1 // loop_body
      %s24 = ssub.s32 %s19, 1
      %s25 = ssub.s32 %s19, 2
      %s26 = sadd.s32 %s19, 1
      %s28 = sadd.s32 %s27, 1
      %p31 = scmp.eq.s32.totalorder %s19, 1
      %p32 = scmp.ne.s32.totalorder %s27, %s29
      %p33 = scmp.eq.s32.totalorder %s19, 0
      %p34 = por %p32, %p33
      %p35 = scmp.ne.s32.totalorder %s27, %s29
      %p36 = scmp.eq.s32.totalorder %s24, 1
      %p37 = por %p35, %p36
      %p38 = scmp.ne.s32.totalorder %s29, %s30
      %p39 = scmp.eq.s32.totalorder %s24, 0
      %p40 = por %p38, %p39
      %p41 = scmp.ne.s32.totalorder %s29, %s30
      %p42 = scmp.eq.s32.totalorder %s25, 1
      %p43 = por %p41, %p42
      %p45 = scmp.ne.s32.totalorder %s30, %s44
      %p46 = scmp.eq.s32.totalorder %s25, 0
      %p47 = por %p45, %p46
      %s48 = ssub.s32 %s19, %s26
      %p49 = scmp.eq.s32.totalorder %s48, 0
      %s51 = sadd.s32 %s50, 1
      %s52 = scalar_select %p49, %s50, %s51
      %p55 = pneg %p49
      %p56 = scmp.eq.s32.totalorder %s19, 1
      %p57 = por %p55, %p56
      %p58 = scmp.ne.s32.totalorder %s50, %s53
      %p59 = scmp.eq.s32.totalorder %s19, 0
      %p60 = por %p58, %p59
      %p61 = scmp.ne.s32.totalorder %s50, %s53
      %p62 = scmp.eq.s32.totalorder %s24, 1
      %p63 = por %p61, %p62
      %p64 = scmp.ne.s32.totalorder %s53, %s54
      %p65 = scmp.eq.s32.totalorder %s24, 0
      %p66 = por %p64, %p65
      %p67 = scmp.ne.s32.totalorder %s53, %s54
      %p68 = scmp.eq.s32.totalorder %s25, 1
      %p69 = por %p67, %p68
      %p71 = scmp.ne.s32.totalorder %s54, %s70
      %p72 = scmp.eq.s32.totalorder %s25, 0
      %p73 = por %p71, %p72
      %s74 = ssub.s32 %s19, %s26
      %p75 = scmp.eq.s32.totalorder %s74, 0
      %s77 = sadd.s32 %s76, 1
      %s78 = scalar_select %p75, %s76, %s77
      %p81 = pneg %p75
      %p82 = scmp.eq.s32.totalorder %s19, 1
      %p83 = por %p81, %p82
      %p84 = scmp.ne.s32.totalorder %s76, %s79
      %p85 = scmp.eq.s32.totalorder %s19, 0
      %p86 = por %p84, %p85
      %p87 = scmp.ne.s32.totalorder %s76, %s79
      %p88 = scmp.eq.s32.totalorder %s24, 1
      %p89 = por %p87, %p88
      %p90 = scmp.ne.s32.totalorder %s79, %s80
      %p91 = scmp.eq.s32.totalorder %s24, 0
      %p92 = por %p90, %p91
      %p93 = scmp.ne.s32.totalorder %s79, %s80
      %p94 = scmp.eq.s32.totalorder %s25, 1
      %p95 = por %p93, %p94
      %p97 = scmp.ne.s32.totalorder %s80, %s96
      %p98 = scmp.eq.s32.totalorder %s25, 0
      %p99 = por %p97, %p98
      %s100 = ssub.s32 %s19, %s26
      %p101 = scmp.eq.s32.totalorder %s100, 0
      %s103 = sadd.s32 %s102, 1
      %s104 = scalar_select %p101, %s102, %s103
      %p107 = pneg %p101
      %p108 = scmp.eq.s32.totalorder %s19, 1
      %p109 = por %p107, %p108
      %p110 = scmp.ne.s32.totalorder %s102, %s105
      %p111 = scmp.eq.s32.totalorder %s19, 0
      %p112 = por %p110, %p111
      %p113 = scmp.ne.s32.totalorder %s102, %s105
      %p114 = scmp.eq.s32.totalorder %s24, 1
      %p115 = por %p113, %p114
      %p116 = scmp.ne.s32.totalorder %s105, %s106
      %p117 = scmp.eq.s32.totalorder %s24, 0
      %p118 = por %p116, %p117
      %p119 = scmp.ne.s32.totalorder %s105, %s106
      %p120 = scmp.eq.s32.totalorder %s25, 1
      %p121 = por %p119, %p120
      %p123 = scmp.ne.s32.totalorder %s106, %s122
      %p124 = scmp.eq.s32.totalorder %s25, 0
      %p125 = por %p123, %p124
      %s127 = sadd.s32 %s126, 1
      %p130 = scmp.eq.s32.totalorder %s19, 1
      %p131 = scmp.ne.s32.totalorder %s126, %s128
      %p132 = scmp.eq.s32.totalorder %s19, 0
      %p133 = por %p131, %p132
      %p134 = scmp.ne.s32.totalorder %s126, %s128
      %p135 = scmp.eq.s32.totalorder %s24, 1
      %p136 = por %p134, %p135
      %p137 = scmp.ne.s32.totalorder %s128, %s129
      %p138 = scmp.eq.s32.totalorder %s24, 0
      %p139 = por %p137, %p138
      %p140 = scmp.ne.s32.totalorder %s128, %s129
      %p141 = scmp.eq.s32.totalorder %s25, 1
      %p142 = por %p140, %p141
      %p144 = scmp.ne.s32.totalorder %s129, %s143
      %p145 = scmp.eq.s32.totalorder %s25, 0
      %p146 = por %p144, %p145
      %s148 = sadd.s32 %s147, 1
      %p151 = scmp.eq.s32.totalorder %s19, 1
      %p152 = scmp.ne.s32.totalorder %s147, %s149
      %p153 = scmp.eq.s32.totalorder %s19, 0
      %p154 = por %p152, %p153
      %p155 = scmp.ne.s32.totalorder %s147, %s149
      %p156 = scmp.eq.s32.totalorder %s24, 1
      %p157 = por %p155, %p156
      %p158 = scmp.ne.s32.totalorder %s149, %s150
      %p159 = scmp.eq.s32.totalorder %s24, 0
      %p160 = por %p158, %p159
      %p161 = scmp.ne.s32.totalorder %s149, %s150
      %p162 = scmp.eq.s32.totalorder %s25, 1
      %p163 = por %p161, %p162
      %p165 = scmp.ne.s32.totalorder %s150, %s164
      %p166 = scmp.eq.s32.totalorder %s25, 0
      %p167 = por %p165, %p166
      %s169 = sadd.s32 %s168, 1
      %p172 = scmp.eq.s32.totalorder %s19, 1
      %p173 = scmp.ne.s32.totalorder %s168, %s170
      %p174 = scmp.eq.s32.totalorder %s19, 0
      %p175 = por %p173, %p174
      %p176 = scmp.ne.s32.totalorder %s168, %s170
      %p177 = scmp.eq.s32.totalorder %s24, 1
      %p178 = por %p176, %p177
      %p179 = scmp.ne.s32.totalorder %s170, %s171
      %p180 = scmp.eq.s32.totalorder %s24, 0
      %p181 = por %p179, %p180
      %p182 = scmp.ne.s32.totalorder %s170, %s171
      %p183 = scmp.eq.s32.totalorder %s25, 1
      %p184 = por %p182, %p183
      %p186 = scmp.ne.s32.totalorder %s171, %s185
      %p187 = scmp.eq.s32.totalorder %s25, 0
      %p188 = por %p186, %p187
      %s190 = sadd.s32 %s189, 1
      %p193 = scmp.eq.s32.totalorder %s19, 1
      %p194 = scmp.ne.s32.totalorder %s189, %s191
      %p195 = scmp.eq.s32.totalorder %s19, 0
      %p196 = por %p194, %p195
      %p197 = scmp.ne.s32.totalorder %s189, %s191
      %p198 = scmp.eq.s32.totalorder %s24, 1
      %p199 = por %p197, %p198
      %p200 = scmp.ne.s32.totalorder %s191, %s192
      %p201 = scmp.eq.s32.totalorder %s24, 0
      %p202 = por %p200, %p201
      %p203 = scmp.ne.s32.totalorder %s191, %s192
      %p204 = scmp.eq.s32.totalorder %s25, 1
      %p205 = por %p203, %p204
      %p207 = scmp.ne.s32.totalorder %s192, %s206
      %p208 = scmp.eq.s32.totalorder %s25, 0
      %p209 = por %p207, %p208
      %s211 = sadd.s32 %s210, 1
      %p214 = scmp.eq.s32.totalorder %s19, 1
      %p215 = scmp.ne.s32.totalorder %s210, %s212
      %p216 = scmp.eq.s32.totalorder %s19, 0
      %p217 = por %p215, %p216
      %p218 = scmp.ne.s32.totalorder %s210, %s212
      %p219 = scmp.eq.s32.totalorder %s24, 1
      %p220 = por %p218, %p219
      %p221 = scmp.ne.s32.totalorder %s212, %s213
      %p222 = scmp.eq.s32.totalorder %s24, 0
      %p223 = por %p221, %p222
      %p224 = scmp.ne.s32.totalorder %s212, %s213
      %p225 = scmp.eq.s32.totalorder %s25, 1
      %p226 = por %p224, %p225
      %p228 = scmp.ne.s32.totalorder %s213, %s227
      %p229 = scmp.eq.s32.totalorder %s25, 0
      %p230 = por %p228, %p229
      %s232 = sadd.s32 %s231, 1
      %p235 = scmp.eq.s32.totalorder %s19, 1
      %p236 = scmp.ne.s32.totalorder %s231, %s233
      %p237 = scmp.eq.s32.totalorder %s19, 0
      %p238 = por %p236, %p237
      %p239 = scmp.ne.s32.totalorder %s231, %s233
      %p240 = scmp.eq.s32.totalorder %s24, 1
      %p241 = por %p239, %p240
      %p242 = scmp.ne.s32.totalorder %s233, %s234
      %p243 = scmp.eq.s32.totalorder %s24, 0
      %p244 = por %p242, %p243
      %p245 = scmp.ne.s32.totalorder %s233, %s234
      %p246 = scmp.eq.s32.totalorder %s25, 1
      %p247 = por %p245, %p246
      %p249 = scmp.ne.s32.totalorder %s234, %s248
      %p250 = scmp.eq.s32.totalorder %s25, 0
      %p251 = por %p249, %p250
      %s253 = sadd.s32 %s252, 1
      %p256 = scmp.eq.s32.totalorder %s19, 1
      %p257 = scmp.ne.s32.totalorder %s252, %s254
      %p258 = scmp.eq.s32.totalorder %s19, 0
      %p259 = por %p257, %p258
      %p260 = scmp.ne.s32.totalorder %s252, %s254
      %p261 = scmp.eq.s32.totalorder %s24, 1
      %p262 = por %p260, %p261
      %p263 = scmp.ne.s32.totalorder %s254, %s255
      %p264 = scmp.eq.s32.totalorder %s24, 0
      %p265 = por %p263, %p264
      %p266 = scmp.ne.s32.totalorder %s254, %s255
      %p267 = scmp.eq.s32.totalorder %s25, 1
      %p268 = por %p266, %p267
      %p270 = scmp.ne.s32.totalorder %s255, %s269
      %p271 = scmp.eq.s32.totalorder %s25, 0
      %p272 = por %p270, %p271
      %s274 = sadd.s32 %s273, 1
      %p277 = scmp.eq.s32.totalorder %s19, 1
      %p278 = scmp.ne.s32.totalorder %s273, %s275
      %p279 = scmp.eq.s32.totalorder %s19, 0
      %p280 = por %p278, %p279
      %p281 = scmp.ne.s32.totalorder %s273, %s275
      %p282 = scmp.eq.s32.totalorder %s24, 1
      %p283 = por %p281, %p282
      %p284 = scmp.ne.s32.totalorder %s275, %s276
      %p285 = scmp.eq.s32.totalorder %s24, 0
      %p286 = por %p284, %p285
      %p287 = scmp.ne.s32.totalorder %s275, %s276
      %p288 = scmp.eq.s32.totalorder %s25, 1
      %p289 = por %p287, %p288
      %p291 = scmp.ne.s32.totalorder %s276, %s290
      %p292 = scmp.eq.s32.totalorder %s25, 0
      %p293 = por %p291, %p292
      %s294 = ssub.s32 %s19, %s26
      %p295 = scmp.eq.s32.totalorder %s294, 0
      %s297 = sadd.s32 %s296, 1
      %s298 = scalar_select %p295, %s296, %s297
      %p301 = pneg %p295
      %p302 = scmp.eq.s32.totalorder %s19, 1
      %p303 = por %p301, %p302
      %p304 = scmp.ne.s32.totalorder %s296, %s299
      %p305 = scmp.eq.s32.totalorder %s19, 0
      %p306 = por %p304, %p305
      %p307 = scmp.ne.s32.totalorder %s296, %s299
      %p308 = scmp.eq.s32.totalorder %s24, 1
      %p309 = por %p307, %p308
      %p310 = scmp.ne.s32.totalorder %s299, %s300
      %p311 = scmp.eq.s32.totalorder %s24, 0
      %p312 = por %p310, %p311
      %p313 = scmp.ne.s32.totalorder %s299, %s300
      %p314 = scmp.eq.s32.totalorder %s25, 1
      %p315 = por %p313, %p314
      %p317 = scmp.ne.s32.totalorder %s300, %s316
      %p318 = scmp.eq.s32.totalorder %s25, 0
      %p319 = por %p317, %p318
      %p320 = scmp.le.s32.totalorder 1, %s19
      %p321 = scmp.lt.s32.totalorder %s19, 3
      %p322 = pnand %p320, %p321
      %p323 = pneg %p322
      // Predicated region
      $region9: #{odefunc_forward.1} parent=5 // pred_check
        _
      $region10: #{odefunc_forward.1} parent=5 // pred_check_branch
        %325 = sbr.rel (%p322) target = $region12
      $region11: #{odefunc_forward.1} parent=5 // pred_region
        %s326 = ssub.s32 %s19, 1
        // Predicated region
        $region13: #{odefunc_forward.1} parent=11 // pred_check
          %p327 = pneg %p40
        $region14: #{odefunc_forward.1} parent=11 // pred_check_branch
          %329 = sbr.rel (%p327) target = $region16
        $region15: #{odefunc_forward.1} parent=11 // pred_region
          _
        $region16: #{odefunc_forward.1} parent=11 // pred_fallthru
          _
        // Predicated region
        $region17: #{odefunc_forward.1} parent=11 // pred_check
          %p330 = pneg %p139
        $region18: #{odefunc_forward.1} parent=11 // pred_check_branch
          %332 = sbr.rel (%p330) target = $region20
        $region19: #{odefunc_forward.1} parent=11 // pred_region
          _
        $region20: #{odefunc_forward.1} parent=11 // pred_fallthru
          _
        // Predicated region
        $region21: #{odefunc_forward.1} parent=11 // pred_check
          %p333 = pneg %p160
        $region22: #{odefunc_forward.1} parent=11 // pred_check_branch
          %335 = sbr.rel (%p333) target = $region24
        $region23: #{odefunc_forward.1} parent=11 // pred_region
          _
        $region24: #{odefunc_forward.1} parent=11 // pred_fallthru
          _
        // Predicated region
        $region25: #{odefunc_forward.1} parent=11 // pred_check
          %p336 = pneg %p181
        $region26: #{odefunc_forward.1} parent=11 // pred_check_branch
          %338 = sbr.rel (%p336) target = $region28
        $region27: #{odefunc_forward.1} parent=11 // pred_region
          _
        $region28: #{odefunc_forward.1} parent=11 // pred_fallthru
          _
        // Predicated region
        $region29: #{odefunc_forward.1} parent=11 // pred_check
          %p339 = pneg %p202
        $region30: #{odefunc_forward.1} parent=11 // pred_check_branch
          %341 = sbr.rel (%p339) target = $region32
        $region31: #{odefunc_forward.1} parent=11 // pred_region
          _
        $region32: #{odefunc_forward.1} parent=11 // pred_fallthru
          _
        // Predicated region
        $region33: #{odefunc_forward.1} parent=11 // pred_check
          %p342 = pneg %p223
        $region34: #{odefunc_forward.1} parent=11 // pred_check_branch
          %344 = sbr.rel (%p342) target = $region36
        $region35: #{odefunc_forward.1} parent=11 // pred_region
          _
        $region36: #{odefunc_forward.1} parent=11 // pred_fallthru
          _
        // Predicated region
        $region37: #{odefunc_forward.1} parent=11 // pred_check
          %p345 = pneg %p244
        $region38: #{odefunc_forward.1} parent=11 // pred_check_branch
          %347 = sbr.rel (%p345) target = $region40
        $region39: #{odefunc_forward.1} parent=11 // pred_region
          _
        $region40: #{odefunc_forward.1} parent=11 // pred_fallthru
          _
        // Predicated region
        $region41: #{odefunc_forward.1} parent=11 // pred_check
          %p348 = pneg %p265
        $region42: #{odefunc_forward.1} parent=11 // pred_check_branch
          %350 = sbr.rel (%p348) target = $region44
        $region43: #{odefunc_forward.1} parent=11 // pred_region
          _
        $region44: #{odefunc_forward.1} parent=11 // pred_fallthru
          _
        // Predicated region
        $region45: #{odefunc_forward.1} parent=11 // pred_check
          %p351 = pneg %p286
        $region46: #{odefunc_forward.1} parent=11 // pred_check_branch
          %353 = sbr.rel (%p351) target = $region48
        $region47: #{odefunc_forward.1} parent=11 // pred_region
          _
        $region48: #{odefunc_forward.1} parent=11 // pred_fallthru
          _
      $region12: #{odefunc_forward.1} parent=5 // pred_fallthru
        _
      %p354 = scmp.lt.s32.totalorder %s19, 2
      // Predicated region
      $region49: #{odefunc_forward.1} parent=5 // pred_check
        %p355 = pneg %p354
      $region50: #{odefunc_forward.1} parent=5 // pred_check_branch
        %357 = sbr.rel (%p355) target = $region52
      $region51: #{odefunc_forward.1} parent=5 // pred_region
        // Predicated region
        $region53: #{odefunc_forward.1} parent=51 // pred_check
          %p358 = pneg %p60
        $region54: #{odefunc_forward.1} parent=51 // pred_check_branch
          %360 = sbr.rel (%p358) target = $region56
        $region55: #{odefunc_forward.1} parent=51 // pred_region
          %p361 = scmp.lt.s32.totalorder %s19, 1
          %s362 = scalar_select %p361, %s19, 1
          %s363 = scalar_lea.vmem %s1, %s362
        $region56: #{odefunc_forward.1} parent=51 // pred_fallthru
          _
        // Predicated region
        $region57: #{odefunc_forward.1} parent=51 // pred_check
          %p364 = pneg %p86
        $region58: #{odefunc_forward.1} parent=51 // pred_check_branch
          %366 = sbr.rel (%p364) target = $region60
        $region59: #{odefunc_forward.1} parent=51 // pred_region
          %s367 = sand.u32 %s76, 1
          %s368 = sand.u32 %s76, 1
          %s369 = smul.addr %s368, 16
          %s370 = scalar_lea.vmem [#allocation3], %s369
          %s371 = smul.addr %s19, 8
          %s372 = scalar_lea.vmem %s2, %s371
          // Predicated region
          $region61: #{odefunc_forward.1} parent=59 // pred_check
            _
          $region62: #{odefunc_forward.1} parent=59 // pred_check_branch
            %374 = sbr.rel (0) target = $region64
          $region63: #{odefunc_forward.1} parent=59 // pred_region
            // Predicated region
            $region65: #{odefunc_forward.1} parent=63 // pred_check
              _
            $region66: #{odefunc_forward.1} parent=63 // pred_check_branch
              %376 = sbr.rel (0) target = $region68
            $region67: #{odefunc_forward.1} parent=63 // pred_region
              // Predicated region
              $region80: #{odefunc_forward.1} parent=67 // pred_check
                _
              $region81: #{odefunc_forward.1} parent=67 // pred_check_branch
                %393 = sbr.rel (0) target = $region83
              $region82: #{odefunc_forward.1} parent=67 // pred_region
                loop: start=0, step=1, limit=1
                $region84: #{odefunc_forward.1} parent=82 // loop_pre_header
                  _
                $region85: #{odefunc_forward.1} parent=82 // loop_header
                  %s395 = sphi 0, %s399
                  %p396 = scmp.ge.s32.totalorder %s395, 1
                  %s400 = sphi %s372, %s372
                  %s401 = sphi %s370, %s370
                $region86: #{odefunc_forward.1} parent=82 // loop_header_branch
                  %398 = sbr.rel (%p396) target = $region90
                $region87: #{odefunc_forward.1} parent=82 // loop_body
                  %v402 = vld [vmem:[%s400] sm:$0xff]
                  %403 = vst [vmem:[%s401] sm:$0xff] %v402
                  %v404 = vld [vmem:[%s400 + $0x10] sm:$0xff]
                  %405 = vst [vmem:[%s401 + $0x8] sm:$0xff] %v404
                $region88: #{odefunc_forward.1} parent=82 // loop_footer
                  %s399 = sadd.s32 1, %s395
                $region89: #{odefunc_forward.1} parent=82 // loop_footer_branch
                  %394 = sbr.rel target = $region85
                $region90: #{odefunc_forward.1} parent=82 // loop_exit
                  _
              $region83: #{odefunc_forward.1} parent=67 // pred_fallthru
                _
              // Predicated region
              $region91: #{odefunc_forward.1} parent=67 // pred_check
                _
              $region92: #{odefunc_forward.1} parent=67 // pred_check_branch
                %407 = sbr.rel target = $region94
              $region93: #{odefunc_forward.1} parent=67 // pred_region
                _
              $region94: #{odefunc_forward.1} parent=67 // pred_fallthru
                _
            $region68: #{odefunc_forward.1} parent=63 // pred_fallthru
              _
            // Predicated region
            $region69: #{odefunc_forward.1} parent=63 // pred_check
              _
            $region70: #{odefunc_forward.1} parent=63 // pred_check_branch
              %378 = sbr.rel target = $region72
            $region71: #{odefunc_forward.1} parent=63 // pred_region
              loop: start=0, step=1, limit=1
              $region73: #{odefunc_forward.1} parent=71 // loop_pre_header
                _
              $region74: #{odefunc_forward.1} parent=71 // loop_header
                %s381 = sphi 0, %s385
                %p382 = scmp.ge.s32.totalorder %s381, 1
                %s386 = sphi %s372, %s372
                %s387 = sphi %s370, %s370
              $region75: #{odefunc_forward.1} parent=71 // loop_header_branch
                %384 = sbr.rel (%p382) target = $region79
              $region76: #{odefunc_forward.1} parent=71 // loop_body
                %v388 = vld [vmem:[%s386] sm:$0xff]
                %389 = vst [vmem:[%s387] sm:$0xff] %v388
                %v390 = vld [vmem:[%s386 + $0x10] sm:$0xff]
                %391 = vst [vmem:[%s387 + $0x8] sm:$0xff] %v390
              $region77: #{odefunc_forward.1} parent=71 // loop_footer
                %s385 = sadd.s32 1, %s381
              $region78: #{odefunc_forward.1} parent=71 // loop_footer_branch
                %380 = sbr.rel target = $region74
              $region79: #{odefunc_forward.1} parent=71 // loop_exit
                _
            $region72: #{odefunc_forward.1} parent=63 // pred_fallthru
              _
          $region64: #{odefunc_forward.1} parent=59 // pred_fallthru
            _
          %408 = vnop
        $region60: #{odefunc_forward.1} parent=51 // pred_fallthru
          _
        // Predicated region
        $region95: #{odefunc_forward.1} parent=51 // pred_check
          %p409 = pneg %p112
        $region96: #{odefunc_forward.1} parent=51 // pred_check_branch
          %411 = sbr.rel (%p409) target = $region98
        $region97: #{odefunc_forward.1} parent=51 // pred_region
          %p412 = scmp.lt.s32.totalorder %s19, 1
          %s413 = scalar_select %p412, %s19, 1
          %s414 = smul.addr %s413, 8
          %s415 = scalar_lea.vmem %s3, %s414
        $region98: #{odefunc_forward.1} parent=51 // pred_fallthru
          _
      $region52: #{odefunc_forward.1} parent=5 // pred_fallthru
        _
      %p416 = scmp.le.s32.totalorder 1, %s19
      %p417 = scmp.lt.s32.totalorder %s19, 3
      %p418 = pnand %p416, %p417
      %p419 = pneg %p418
      // Predicated region
      $region99: #{odefunc_forward.1} parent=5 // pred_check
        _
      $region100: #{odefunc_forward.1} parent=5 // pred_check_branch
        %421 = sbr.rel (%p418) target = $region102
      $region101: #{odefunc_forward.1} parent=5 // pred_region
        %s422 = ssub.s32 %s19, 1
        %s423 = sand.u32 %s79, 1
        %s424 = sand.u32 %s79, 1
        %s425 = smul.addr %s424, 16
        %s426 = scalar_lea.vmem [#allocation3], %s425
        // Predicated region
        $region103: #{odefunc_forward.1} parent=101 // pred_check
          %p427 = pneg %p92
        $region104: #{odefunc_forward.1} parent=101 // pred_check_branch
          %429 = sbr.rel (%p427) target = $region106
        $region105: #{odefunc_forward.1} parent=101 // pred_region
          _
        $region106: #{odefunc_forward.1} parent=101 // pred_fallthru
          _
        %p430 = pneg %p40
        %p431 = pneg %p37
        %p432 = scmp.lt.s32.totalorder %s24, 1
        %s433 = scalar_select %p432, %s24, 1
        %s434 = scalar_lea.vmem %s1, %s433
        %p435 = pneg %p66
        %p436 = pneg %p63
        %s437 = sand.u32 %s79, 1
        %s438 = sand.u32 %s79, 1
        %s439 = smul.addr %s438, 16
        %s440 = scalar_lea.vmem [#allocation3], %s439
        %p441 = pneg %p92
        %p442 = pneg %p89
        %p443 = scmp.lt.s32.totalorder %s24, 1
        %s444 = scalar_select %p443, %s24, 1
        %s445 = smul.addr %s444, 8
        %s446 = scalar_lea.vmem %s3, %s445
        %p447 = pneg %p118
        %p448 = pneg %p115
        %p449 = pneg %p139
        %p450 = pneg %p136
        %p451 = pneg %p160
        %p452 = pneg %p157
        %p453 = pneg %p181
        %p454 = pneg %p178
        %p455 = pneg %p202
        %p456 = pneg %p199
        %p457 = pneg %p223
        %p458 = pneg %p220
        %p459 = pneg %p244
        %p460 = pneg %p241
        %p461 = pneg %p265
        %p462 = pneg %p262
        %p463 = pneg %p286
        %p464 = pneg %p283
        %p465 = pneg %p312
        %p466 = pneg %p309
        %s467 = sand.u32 %s299, 1
        %s468 = sand.u32 %s299, 1
        %s469 = smul.addr %s468, 16
        %s470 = scalar_lea.vmem [#allocation4], %s469
        %p471 = scmp.lt.s32.totalorder %s24, 1
        %s472 = scalar_select %p471, %s24, 1
        %s473 = scalar_lea.vmem %s1, %s472
        %p474 = scmp.lt.s32.totalorder %s24, 1
        %s475 = scalar_select %p474, %s24, 1
        %s476 = smul.addr %s475, 8
        %s477 = scalar_lea.vmem %s3, %s476
        %s478 = sld [smem:[#allocation2]]
        %v479 = vld [vmem:[%s473] sm:$0x1]
        %v480 = vstv %s478
        %v481 = vmul.f32 %v480, %v479
        %v482 = vld [vmem:[%s4] sm:$0xff]
        %v483 = vld [vmem:[%s4 + $0x8] sm:$0xff]
        %v484 = vld [vmem:[%s4 + $0x10] sm:$0xff]
        %v485 = vld [vmem:[%s4 + $0x18] sm:$0xff]
        %v486 = vld [vmem:[%s5] sm:$0xff]
        %v487 = vld [vmem:[%s5 + $0x8] sm:$0xff]
        %v488 = vld [vmem:[%s5 + $0x10] sm:$0xff]
        %v489 = vld [vmem:[%s5 + $0x18] sm:$0xff]
        %v490 = vld [vmem:[%s6] sm:$0xff]
        %v491 = vld [vmem:[%s6 + $0x8] sm:$0xff]
        %v492 = vld [vmem:[%s6 + $0x10] sm:$0xff]
        %v493 = vld [vmem:[%s6 + $0x18] sm:$0xff]
        %v494 = vld [vmem:[%s7] sm:$0xff]
        %v495 = vld [vmem:[%s7 + $0x8] sm:$0xff]
        %v496 = vld [vmem:[%s7 + $0x10] sm:$0xff]
        %v497 = vld [vmem:[%s7 + $0x18] sm:$0xff]
        %499 = vset.pattern.permute.xlu0 0
        %500 = vperm.xlu0 %499, %v482
        %v501 = vpop.permute.xlu0 %500
        %504 = vset.pattern.permute.xlu0 0
        %505 = vperm.xlu0 %504, %v483
        %v506 = vpop.permute.xlu0 %505
        %509 = vset.pattern.permute.xlu0 0
        %510 = vperm.xlu0 %509, %v484
        %v511 = vpop.permute.xlu0 %510
        %514 = vset.pattern.permute.xlu0 0
        %515 = vperm.xlu0 %514, %v485
        %v516 = vpop.permute.xlu0 %515
        %v519 = vlaneseq
        %v520 = vshrl.u32 %v519, 7
        %v521 = vsub.s32 0, %v520
        %v522 = vrot.slane %v481, %v521
        %v524 = vmul.f32 %v501, %v522
        %v525 = vmul.f32 %v506, %v522
        %v526 = vmul.f32 %v511, %v522
        %v527 = vmul.f32 %v516, %v522
        %v528 = vld [vmem:[%s426] sm:$0xff]
        %v529 = vld [vmem:[%s426 + $0x8] sm:$0xff]
        %vm530 = vcmask 130048
        %v532 = vsel %vm530, %v486, 0
        %v535 = vsel %vm530, %v487, 0
        %v538 = vsel %vm530, %v488, 0
        %v541 = vsel %vm530, %v489, 0
        %543 = vmatprep.subr.mxu0 0.0
        %544 = vmatpush1.msra.mxu0 %v528
        %545 = vmatprep.subr.mxu0 0.0
        %546 = vmatpush1.msra.mxu0 %v529
        %547 = vmatprep.subr.mxu0 0.0
        %548 = vmatpush1.msra.mxu0 0.0
        %549 = vmatprep.subr.mxu0 0.0
        %550 = vmatpush1.msra.mxu0 0.0
        %551 = vmatprep.subr.mxu0 0.0
        %552 = vmatpush1.msra.mxu0 0.0
        %553 = vmatprep.subr.mxu0 0.0
        %554 = vmatpush1.msra.mxu0 0.0
        %555 = vmatprep.subr.mxu0 0.0
        %556 = vmatpush1.msra.mxu0 0.0
        %557 = vmatprep.subr.mxu0 0.0
        %558 = vmatpush1.msra.mxu0 0.0
        %559 = vmatprep.subr.mxu0 0.0
        %560 = vmatpush1.msra.mxu0 0.0
        %561 = vmatprep.subr.mxu0 0.0
        %562 = vmatpush1.msra.mxu0 0.0
        %563 = vmatprep.subr.mxu0 0.0
        %564 = vmatpush1.msra.mxu0 0.0
        %565 = vmatprep.subr.mxu0 0.0
        %566 = vmatpush1.msra.mxu0 0.0
        %567 = vmatprep.subr.mxu0 0.0
        %568 = vmatpush1.msra.mxu0 0.0
        %569 = vmatprep.subr.mxu0 0.0
        %570 = vmatpush1.msra.mxu0 0.0
        %571 = vmatprep.subr.mxu0 0.0
        %572 = vmatpush1.msra.mxu0 0.0
        %573 = vmatprep.subr.mxu0 0.0
        %574 = vmatpush1.msra.mxu0 0.0
        %575 = vmatprep.subr.mxu0 0.0
        %576 = vmatpush1.msra.mxu0 0.0
        %577 = vmatprep.subr.mxu0 0.0
        %578 = vmatpush1.msra.mxu0 0.0
        %579 = vmatprep.subr.mxu0 0.0
        %580 = vmatpush1.msra.mxu0 0.0
        %581 = vmatprep.subr.mxu0 0.0
        %582 = vmatpush1.msra.mxu0 0.0
        %583 = vmatprep.subr.mxu0 0.0
        %584 = vmatpush1.msra.mxu0 0.0
        %585 = vmatprep.subr.mxu0 0.0
        %586 = vmatpush1.msra.mxu0 0.0
        %587 = vmatprep.subr.mxu0 0.0
        %588 = vmatpush1.msra.mxu0 0.0
        %589 = vmatprep.subr.mxu0 0.0
        %590 = vmatpush1.msra.mxu0 0.0
        %591 = vmatprep.subr.mxu0 0.0
        %592 = vmatpush1.msra.mxu0 0.0
        %593 = vmatprep.subr.mxu0 0.0
        %594 = vmatpush1.msra.mxu0 0.0
        %595 = vmatprep.subr.mxu0 0.0
        %596 = vmatpush1.msra.mxu0 0.0
        %597 = vmatprep.subr.mxu0 0.0
        %598 = vmatpush1.msra.mxu0 0.0
        %599 = vmatprep.subr.mxu0 0.0
        %600 = vmatpush1.msra.mxu0 0.0
        %601 = vmatprep.subr.mxu0 0.0
        %602 = vmatpush1.msra.mxu0 0.0
        %603 = vmatprep.subr.mxu0 0.0
        %604 = vmatpush1.msra.mxu0 0.0
        %605 = vmatprep.subr.mxu0 0.0
        %606 = vmatpush1.msra.mxu0 0.0
        %607 = vmatprep.mubr.f32.mxu0 0.0
        %608 = vmatmul.mubr.f32.gmra.mrb[0].mxu0 %v532
        %v609 = vpop.f32.mrb[0].mxu0
        %v610 = vadd.f32 0.0, %v609
        %v611 = vpop.f32.mrb[0].mxu0
        %612 = vmatprep.mubr.f32.mxu0 0.0
        %613 = vmatmul.mubr.f32.gmra.mrb[0].mxu0 %v535
        %v614 = vpop.f32.mrb[0].mxu0
        %v615 = vadd.f32 0.0, %v614
        %v616 = vpop.f32.mrb[0].mxu0
        %617 = vmatprep.mubr.f32.mxu0 0.0
        %618 = vmatmul.mubr.f32.gmra.mrb[0].mxu0 %v538
        %v619 = vpop.f32.mrb[0].mxu0
        %v620 = vadd.f32 0.0, %v619
        %v621 = vpop.f32.mrb[0].mxu0
        %622 = vmatprep.mubr.f32.mxu0 0.0
        %623 = vmatmul.mubr.f32.gmra.mrb[0].mxu0 %v541
        %v624 = vpop.f32.mrb[0].mxu0
        %v625 = vadd.f32 0.0, %v624
        %v626 = vpop.f32.mrb[0].mxu0
        %627 = vdwg.mxu0
        %v628 = vadd.f32 %v524, %v610
        %v629 = vadd.f32 %v525, %v615
        %v630 = vadd.f32 %v526, %v620
        %v631 = vadd.f32 %v527, %v625
        %v632 = vld [vmem:[%s477] sm:$0xff]
        %vm633 = vcmask 64512
        %v635 = vsel %vm633, %v490, 0
        %v638 = vsel %vm633, %v491, 0
        %v641 = vsel %vm633, %v492, 0
        %v644 = vsel %vm633, %v493, 0
        %646 = vmatprep.subr.mxu0 0.0
        %647 = vmatpush1.msra.mxu0 %v632
        %648 = vmatprep.subr.mxu0 0.0
        %649 = vmatpush1.msra.mxu0 0.0
        %650 = vmatprep.subr.mxu0 0.0
        %651 = vmatpush1.msra.mxu0 0.0
        %652 = vmatprep.subr.mxu0 0.0
        %653 = vmatpush1.msra.mxu0 0.0
        %654 = vmatprep.subr.mxu0 0.0
        %655 = vmatpush1.msra.mxu0 0.0
        %656 = vmatprep.subr.mxu0 0.0
        %657 = vmatpush1.msra.mxu0 0.0
        %658 = vmatprep.subr.mxu0 0.0
        %659 = vmatpush1.msra.mxu0 0.0
        %660 = vmatprep.subr.mxu0 0.0
        %661 = vmatpush1.msra.mxu0 0.0
        %662 = vmatprep.subr.mxu0 0.0
        %663 = vmatpush1.msra.mxu0 0.0
        %664 = vmatprep.subr.mxu0 0.0
        %665 = vmatpush1.msra.mxu0 0.0
        %666 = vmatprep.subr.mxu0 0.0
        %667 = vmatpush1.msra.mxu0 0.0
        %668 = vmatprep.subr.mxu0 0.0
        %669 = vmatpush1.msra.mxu0 0.0
        %670 = vmatprep.subr.mxu0 0.0
        %671 = vmatpush1.msra.mxu0 0.0
        %672 = vmatprep.subr.mxu0 0.0
        %673 = vmatpush1.msra.mxu0 0.0
        %674 = vmatprep.subr.mxu0 0.0
        %675 = vmatpush1.msra.mxu0 0.0
        %676 = vmatprep.subr.mxu0 0.0
        %677 = vmatpush1.msra.mxu0 0.0
        %678 = vmatprep.subr.mxu0 0.0
        %679 = vmatpush1.msra.mxu0 0.0
        %680 = vmatprep.subr.mxu0 0.0
        %681 = vmatpush1.msra.mxu0 0.0
        %682 = vmatprep.subr.mxu0 0.0
        %683 = vmatpush1.msra.mxu0 0.0
        %684 = vmatprep.subr.mxu0 0.0
        %685 = vmatpush1.msra.mxu0 0.0
        %686 = vmatprep.subr.mxu0 0.0
        %687 = vmatpush1.msra.mxu0 0.0
        %688 = vmatprep.subr.mxu0 0.0
        %689 = vmatpush1.msra.mxu0 0.0
        %690 = vmatprep.subr.mxu0 0.0
        %691 = vmatpush1.msra.mxu0 0.0
        %692 = vmatprep.subr.mxu0 0.0
        %693 = vmatpush1.msra.mxu0 0.0
        %694 = vmatprep.subr.mxu0 0.0
        %695 = vmatpush1.msra.mxu0 0.0
        %696 = vmatprep.subr.mxu0 0.0
        %697 = vmatpush1.msra.mxu0 0.0
        %698 = vmatprep.subr.mxu0 0.0
        %699 = vmatpush1.msra.mxu0 0.0
        %700 = vmatprep.subr.mxu0 0.0
        %701 = vmatpush1.msra.mxu0 0.0
        %702 = vmatprep.subr.mxu0 0.0
        %703 = vmatpush1.msra.mxu0 0.0
        %704 = vmatprep.subr.mxu0 0.0
        %705 = vmatpush1.msra.mxu0 0.0
        %706 = vmatprep.subr.mxu0 0.0
        %707 = vmatpush1.msra.mxu0 0.0
        %708 = vmatprep.subr.mxu0 0.0
        %709 = vmatpush1.msra.mxu0 0.0
        %710 = vmatprep.mubr.f32.mxu0 0.0
        %711 = vmatmul.mubr.f32.gmra.mrb[0].mxu0 %v635
        %v712 = vpop.f32.mrb[0].mxu0
        %v713 = vadd.f32 0.0, %v712
        %v714 = vpop.f32.mrb[0].mxu0
        %715 = vmatprep.mubr.f32.mxu0 0.0
        %716 = vmatmul.mubr.f32.gmra.mrb[0].mxu0 %v638
        %v717 = vpop.f32.mrb[0].mxu0
        %v718 = vadd.f32 0.0, %v717
        %v719 = vpop.f32.mrb[0].mxu0
        %720 = vmatprep.mubr.f32.mxu0 0.0
        %721 = vmatmul.mubr.f32.gmra.mrb[0].mxu0 %v641
        %v722 = vpop.f32.mrb[0].mxu0
        %v723 = vadd.f32 0.0, %v722
        %v724 = vpop.f32.mrb[0].mxu0
        %725 = vmatprep.mubr.f32.mxu0 0.0
        %726 = vmatmul.mubr.f32.gmra.mrb[0].mxu0 %v644
        %v727 = vpop.f32.mrb[0].mxu0
        %v728 = vadd.f32 0.0, %v727
        %v729 = vpop.f32.mrb[0].mxu0
        %730 = vdwg.mxu0
        %v731 = vadd.f32 %v628, %v713
        %v732 = vadd.f32 %v629, %v718
        %v733 = vadd.f32 %v630, %v723
        %v734 = vadd.f32 %v631, %v728
        %736 = vset.pattern.permute.xlu0 0
        %737 = vperm.xlu0 %736, %v494
        %v738 = vpop.permute.xlu0 %737
        %741 = vset.pattern.permute.xlu0 0
        %742 = vperm.xlu0 %741, %v495
        %v743 = vpop.permute.xlu0 %742
        %746 = vset.pattern.permute.xlu0 0
        %747 = vperm.xlu0 %746, %v496
        %v748 = vpop.permute.xlu0 %747
        %751 = vset.pattern.permute.xlu0 0
        %752 = vperm.xlu0 %751, %v497
        %v753 = vpop.permute.xlu0 %752
        %v755 = vadd.f32 %v731, %v738
        %v756 = vadd.f32 %v732, %v743
        %v757 = vadd.f32 %v733, %v748
        %v758 = vadd.f32 %v734, %v753
        %v759 = vld [vmem:[%s8] sm:$0xff]
        %v760 = vld [vmem:[%s8 + $0x8] sm:$0xff]
        %v761 = vld [vmem:[%s8 + $0x10] sm:$0xff]
        %v762 = vld [vmem:[%s8 + $0x18] sm:$0xff]
        %v763 = vld [vmem:[%s9] sm:$0xff]
        %v764 = vld [vmem:[%s9 + $0x8] sm:$0xff]
        %v765 = vld [vmem:[%s9 + $0x10] sm:$0xff]
        %v766 = vld [vmem:[%s9 + $0x18] sm:$0xff]
        %v767 = vtanh.pop %v755
        %v768 = vtanh.pop %v756
        %v769 = vtanh.pop %v757
        %v770 = vtanh.pop %v758
        %772 = vset.pattern.permute.xlu0 0
        %773 = vperm.xlu0 %772, %v763
        %v774 = vpop.permute.xlu0 %773
        %777 = vset.pattern.permute.xlu0 0
        %778 = vperm.xlu0 %777, %v764
        %v779 = vpop.permute.xlu0 %778
        %782 = vset.pattern.permute.xlu0 0
        %783 = vperm.xlu0 %782, %v765
        %v784 = vpop.permute.xlu0 %783
        %787 = vset.pattern.permute.xlu0 0
        %788 = vperm.xlu0 %787, %v766
        %v789 = vpop.permute.xlu0 %788
        %vm791 = vcmask 261120
        %v793 = vsel %vm791, %v759, 0
        %v796 = vsel %vm791, %v760, 0
        %v799 = vsel %vm791, %v761, 0
        %v802 = vsel %vm791, %v762, 0
        %804 = vmatprep.subr.mxu0 0.0
        %805 = vmatpush1.msra.mxu0 %v767
        %806 = vmatprep.subr.mxu0 0.0
        %807 = vmatpush1.msra.mxu0 %v768
        %808 = vmatprep.subr.mxu0 0.0
        %809 = vmatpush1.msra.mxu0 %v769
        %810 = vmatprep.subr.mxu0 0.0
        %811 = vmatpush1.msra.mxu0 %v770
        %812 = vmatprep.subr.mxu0 0.0
        %813 = vmatpush1.msra.mxu0 0.0
        %814 = vmatprep.subr.mxu0 0.0
        %815 = vmatpush1.msra.mxu0 0.0
        %816 = vmatprep.subr.mxu0 0.0
        %817 = vmatpush1.msra.mxu0 0.0
        %818 = vmatprep.subr.mxu0 0.0
        %819 = vmatpush1.msra.mxu0 0.0
        %820 = vmatprep.subr.mxu0 0.0
        %821 = vmatpush1.msra.mxu0 0.0
        %822 = vmatprep.subr.mxu0 0.0
        %823 = vmatpush1.msra.mxu0 0.0
        %824 = vmatprep.subr.mxu0 0.0
        %825 = vmatpush1.msra.mxu0 0.0
        %826 = vmatprep.subr.mxu0 0.0
        %827 = vmatpush1.msra.mxu0 0.0
        %828 = vmatprep.subr.mxu0 0.0
        %829 = vmatpush1.msra.mxu0 0.0
        %830 = vmatprep.subr.mxu0 0.0
        %831 = vmatpush1.msra.mxu0 0.0
        %832 = vmatprep.subr.mxu0 0.0
        %833 = vmatpush1.msra.mxu0 0.0
        %834 = vmatprep.subr.mxu0 0.0
        %835 = vmatpush1.msra.mxu0 0.0
        %836 = vmatprep.subr.mxu0 0.0
        %837 = vmatpush1.msra.mxu0 0.0
        %838 = vmatprep.subr.mxu0 0.0
        %839 = vmatpush1.msra.mxu0 0.0
        %840 = vmatprep.subr.mxu0 0.0
        %841 = vmatpush1.msra.mxu0 0.0
        %842 = vmatprep.subr.mxu0 0.0
        %843 = vmatpush1.msra.mxu0 0.0
        %844 = vmatprep.subr.mxu0 0.0
        %845 = vmatpush1.msra.mxu0 0.0
        %846 = vmatprep.subr.mxu0 0.0
        %847 = vmatpush1.msra.mxu0 0.0
        %848 = vmatprep.subr.mxu0 0.0
        %849 = vmatpush1.msra.mxu0 0.0
        %850 = vmatprep.subr.mxu0 0.0
        %851 = vmatpush1.msra.mxu0 0.0
        %852 = vmatprep.subr.mxu0 0.0
        %853 = vmatpush1.msra.mxu0 0.0
        %854 = vmatprep.subr.mxu0 0.0
        %855 = vmatpush1.msra.mxu0 0.0
        %856 = vmatprep.subr.mxu0 0.0
        %857 = vmatpush1.msra.mxu0 0.0
        %858 = vmatprep.subr.mxu0 0.0
        %859 = vmatpush1.msra.mxu0 0.0
        %860 = vmatprep.subr.mxu0 0.0
        %861 = vmatpush1.msra.mxu0 0.0
        %862 = vmatprep.subr.mxu0 0.0
        %863 = vmatpush1.msra.mxu0 0.0
        %864 = vmatprep.subr.mxu0 0.0
        %865 = vmatpush1.msra.mxu0 0.0
        %866 = vmatprep.subr.mxu0 0.0
        %867 = vmatpush1.msra.mxu0 0.0
        %868 = vmatprep.mubr.f32.mxu0 0.0
        %869 = vmatmul.mubr.f32.gmra.mrb[0].mxu0 %v793
        %v870 = vpop.f32.mrb[0].mxu0
        %v871 = vadd.f32 %v774, %v870
        %v872 = vpop.f32.mrb[0].mxu0
        %873 = vmatprep.mubr.f32.mxu0 0.0
        %874 = vmatmul.mubr.f32.gmra.mrb[0].mxu0 %v796
        %v875 = vpop.f32.mrb[0].mxu0
        %v876 = vadd.f32 %v779, %v875
        %v877 = vpop.f32.mrb[0].mxu0
        %878 = vmatprep.mubr.f32.mxu0 0.0
        %879 = vmatmul.mubr.f32.gmra.mrb[0].mxu0 %v799
        %v880 = vpop.f32.mrb[0].mxu0
        %v881 = vadd.f32 %v784, %v880
        %v882 = vpop.f32.mrb[0].mxu0
        %883 = vmatprep.mubr.f32.mxu0 0.0
        %884 = vmatmul.mubr.f32.gmra.mrb[0].mxu0 %v802
        %v885 = vpop.f32.mrb[0].mxu0
        %v886 = vadd.f32 %v789, %v885
        %v887 = vpop.f32.mrb[0].mxu0
        %888 = vdwg.mxu0
        %v889 = vld [vmem:[%s10] sm:$0xff]
        %v890 = vld [vmem:[%s10 + $0x8] sm:$0xff]
        %v891 = vld [vmem:[%s11] sm:$0xff]
        %v892 = vld [vmem:[%s11 + $0x8] sm:$0xff]
        %v893 = vtanh.pop %v871
        %v894 = vtanh.pop %v876
        %v895 = vtanh.pop %v881
        %v896 = vtanh.pop %v886
        %898 = vset.pattern.permute.xlu0 0
        %899 = vperm.xlu0 %898, %v891
        %v900 = vpop.permute.xlu0 %899
        %903 = vset.pattern.permute.xlu0 0
        %904 = vperm.xlu0 %903, %v892
        %v905 = vpop.permute.xlu0 %904
        %v908 = vsel %vm791, %v889, 0
        %v911 = vsel %vm791, %v890, 0
        %913 = vmatprep.subr.mxu0 0.0
        %914 = vmatpush1.msra.mxu0 %v893
        %915 = vmatprep.subr.mxu0 0.0
        %916 = vmatpush1.msra.mxu0 %v894
        %917 = vmatprep.subr.mxu0 0.0
        %918 = vmatpush1.msra.mxu0 %v895
        %919 = vmatprep.subr.mxu0 0.0
        %920 = vmatpush1.msra.mxu0 %v896
        %921 = vmatprep.subr.mxu0 0.0
        %922 = vmatpush1.msra.mxu0 0.0
        %923 = vmatprep.subr.mxu0 0.0
        %924 = vmatpush1.msra.mxu0 0.0
        %925 = vmatprep.subr.mxu0 0.0
        %926 = vmatpush1.msra.mxu0 0.0
        %927 = vmatprep.subr.mxu0 0.0
        %928 = vmatpush1.msra.mxu0 0.0
        %929 = vmatprep.subr.mxu0 0.0
        %930 = vmatpush1.msra.mxu0 0.0
        %931 = vmatprep.subr.mxu0 0.0
        %932 = vmatpush1.msra.mxu0 0.0
        %933 = vmatprep.subr.mxu0 0.0
        %934 = vmatpush1.msra.mxu0 0.0
        %935 = vmatprep.subr.mxu0 0.0
        %936 = vmatpush1.msra.mxu0 0.0
        %937 = vmatprep.subr.mxu0 0.0
        %938 = vmatpush1.msra.mxu0 0.0
        %939 = vmatprep.subr.mxu0 0.0
        %940 = vmatpush1.msra.mxu0 0.0
        %941 = vmatprep.subr.mxu0 0.0
        %942 = vmatpush1.msra.mxu0 0.0
        %943 = vmatprep.subr.mxu0 0.0
        %944 = vmatpush1.msra.mxu0 0.0
        %945 = vmatprep.subr.mxu0 0.0
        %946 = vmatpush1.msra.mxu0 0.0
        %947 = vmatprep.subr.mxu0 0.0
        %948 = vmatpush1.msra.mxu0 0.0
        %949 = vmatprep.subr.mxu0 0.0
        %950 = vmatpush1.msra.mxu0 0.0
        %951 = vmatprep.subr.mxu0 0.0
        %952 = vmatpush1.msra.mxu0 0.0
        %953 = vmatprep.subr.mxu0 0.0
        %954 = vmatpush1.msra.mxu0 0.0
        %955 = vmatprep.subr.mxu0 0.0
        %956 = vmatpush1.msra.mxu0 0.0
        %957 = vmatprep.subr.mxu0 0.0
        %958 = vmatpush1.msra.mxu0 0.0
        %959 = vmatprep.subr.mxu0 0.0
        %960 = vmatpush1.msra.mxu0 0.0
        %961 = vmatprep.subr.mxu0 0.0
        %962 = vmatpush1.msra.mxu0 0.0
        %963 = vmatprep.subr.mxu0 0.0
        %964 = vmatpush1.msra.mxu0 0.0
        %965 = vmatprep.subr.mxu0 0.0
        %966 = vmatpush1.msra.mxu0 0.0
        %967 = vmatprep.subr.mxu0 0.0
        %968 = vmatpush1.msra.mxu0 0.0
        %969 = vmatprep.subr.mxu0 0.0
        %970 = vmatpush1.msra.mxu0 0.0
        %971 = vmatprep.subr.mxu0 0.0
        %972 = vmatpush1.msra.mxu0 0.0
        %973 = vmatprep.subr.mxu0 0.0
        %974 = vmatpush1.msra.mxu0 0.0
        %975 = vmatprep.subr.mxu0 0.0
        %976 = vmatpush1.msra.mxu0 0.0
        %977 = vmatprep.mubr.f32.mxu0 0.0
        %978 = vmatmul.mubr.f32.gmra.mrb[0].mxu0 %v908
        %v979 = vpop.f32.mrb[0].mxu0
        %v980 = vadd.f32 %v900, %v979
        %v981 = vpop.f32.mrb[0].mxu0
        %982 = vmatprep.mubr.f32.mxu0 0.0
        %983 = vmatmul.mubr.f32.gmra.mrb[0].mxu0 %v911
        %v984 = vpop.f32.mrb[0].mxu0
        %v985 = vadd.f32 %v905, %v984
        %v986 = vpop.f32.mrb[0].mxu0
        %987 = vdwg.mxu0
        %v989 = vlaneseq
        %v990 = vshrl.u32 %v989, 7
        %v991 = vsub.s32 0, %v990
        %v992 = vrot.slane %v479, %v991
        %v994 = vmul.f32 %v992, %v980
        %v995 = vmul.f32 %v992, %v985
        %996 = vst [vmem:[%s470] sm:$0xff] %v994
        %997 = vst [vmem:[%s470 + $0x8] sm:$0xff] %v995
        %s998 = sand.u32 %s299, 1
        %s999 = sand.u32 %s299, 1
        %s1000 = smul.addr %s999, 16
        %s1001 = scalar_lea.vmem [#allocation4], %s1000
        // Predicated region
        $region107: #{odefunc_forward.1} parent=101 // pred_check
          %p1002 = pneg %p309
        $region108: #{odefunc_forward.1} parent=101 // pred_check_branch
          %1004 = sbr.rel (%p1002) target = $region110
        $region109: #{odefunc_forward.1} parent=101 // pred_region
          %s1005 = smul.addr %s24, 8
          %s1006 = scalar_lea.vmem %s12, %s1005
          // Predicated region
          $region111: #{odefunc_forward.1} parent=109 // pred_check
            _
          $region112: #{odefunc_forward.1} parent=109 // pred_check_branch
            %1008 = sbr.rel (0) target = $region114
          $region113: #{odefunc_forward.1} parent=109 // pred_region
            // Predicated region
            $region115: #{odefunc_forward.1} parent=113 // pred_check
              _
            $region116: #{odefunc_forward.1} parent=113 // pred_check_branch
              %1010 = sbr.rel (0) target = $region118
            $region117: #{odefunc_forward.1} parent=113 // pred_region
              // Predicated region
              $region130: #{odefunc_forward.1} parent=117 // pred_check
                _
              $region131: #{odefunc_forward.1} parent=117 // pred_check_branch
                %1027 = sbr.rel (0) target = $region133
              $region132: #{odefunc_forward.1} parent=117 // pred_region
                loop: start=0, step=1, limit=1
                $region134: #{odefunc_forward.1} parent=132 // loop_pre_header
                  _
                $region135: #{odefunc_forward.1} parent=132 // loop_header
                  %s1029 = sphi 0, %s1033
                  %p1030 = scmp.ge.s32.totalorder %s1029, 1
                  %s1034 = sphi %s1001, %s1001
                  %s1035 = sphi %s1006, %s1006
                $region136: #{odefunc_forward.1} parent=132 // loop_header_branch
                  %1032 = sbr.rel (%p1030) target = $region140
                $region137: #{odefunc_forward.1} parent=132 // loop_body
                  %v1036 = vld [vmem:[%s1034] sm:$0xff]
                  %1037 = vst [vmem:[%s1035] sm:$0xff] %v1036
                  %v1038 = vld [vmem:[%s1034 + $0x8] sm:$0xff]
                  %1039 = vst [vmem:[%s1035 + $0x10] sm:$0xff] %v1038
                $region138: #{odefunc_forward.1} parent=132 // loop_footer
                  %s1033 = sadd.s32 1, %s1029
                $region139: #{odefunc_forward.1} parent=132 // loop_footer_branch
                  %1028 = sbr.rel target = $region135
                $region140: #{odefunc_forward.1} parent=132 // loop_exit
                  _
              $region133: #{odefunc_forward.1} parent=117 // pred_fallthru
                _
              // Predicated region
              $region141: #{odefunc_forward.1} parent=117 // pred_check
                _
              $region142: #{odefunc_forward.1} parent=117 // pred_check_branch
                %1041 = sbr.rel target = $region144
              $region143: #{odefunc_forward.1} parent=117 // pred_region
                _
              $region144: #{odefunc_forward.1} parent=117 // pred_fallthru
                _
            $region118: #{odefunc_forward.1} parent=113 // pred_fallthru
              _
            // Predicated region
            $region119: #{odefunc_forward.1} parent=113 // pred_check
              _
            $region120: #{odefunc_forward.1} parent=113 // pred_check_branch
              %1012 = sbr.rel target = $region122
            $region121: #{odefunc_forward.1} parent=113 // pred_region
              loop: start=0, step=1, limit=1
              $region123: #{odefunc_forward.1} parent=121 // loop_pre_header
                _
              $region124: #{odefunc_forward.1} parent=121 // loop_header
                %s1015 = sphi 0, %s1019
                %p1016 = scmp.ge.s32.totalorder %s1015, 1
                %s1020 = sphi %s1001, %s1001
                %s1021 = sphi %s1006, %s1006
              $region125: #{odefunc_forward.1} parent=121 // loop_header_branch
                %1018 = sbr.rel (%p1016) target = $region129
              $region126: #{odefunc_forward.1} parent=121 // loop_body
                %v1022 = vld [vmem:[%s1020] sm:$0xff]
                %1023 = vst [vmem:[%s1021] sm:$0xff] %v1022
                %v1024 = vld [vmem:[%s1020 + $0x8] sm:$0xff]
                %1025 = vst [vmem:[%s1021 + $0x10] sm:$0xff] %v1024
              $region127: #{odefunc_forward.1} parent=121 // loop_footer
                %s1019 = sadd.s32 1, %s1015
              $region128: #{odefunc_forward.1} parent=121 // loop_footer_branch
                %1014 = sbr.rel target = $region124
              $region129: #{odefunc_forward.1} parent=121 // loop_exit
                _
            $region122: #{odefunc_forward.1} parent=113 // pred_fallthru
              _
          $region114: #{odefunc_forward.1} parent=109 // pred_fallthru
            _
          %1042 = vnop
        $region110: #{odefunc_forward.1} parent=101 // pred_fallthru
          _
      $region102: #{odefunc_forward.1} parent=5 // pred_fallthru
        _
      %p1043 = scmp.le.s32.totalorder 2, %s19
      // Predicated region
      $region145: #{odefunc_forward.1} parent=5 // pred_check
        %p1044 = pneg %p1043
      $region146: #{odefunc_forward.1} parent=5 // pred_check_branch
        %1046 = sbr.rel (%p1044) target = $region148
      $region147: #{odefunc_forward.1} parent=5 // pred_region
        %s1047 = ssub.s32 %s19, 2
        // Predicated region
        $region149: #{odefunc_forward.1} parent=147 // pred_check
          %p1048 = pneg %p315
        $region150: #{odefunc_forward.1} parent=147 // pred_check_branch
          %1050 = sbr.rel (%p1048) target = $region152
        $region151: #{odefunc_forward.1} parent=147 // pred_region
          %s1051 = sand.u32 %s300, 1
          %s1052 = sand.u32 %s300, 1
          %s1053 = smul.addr %s1052, 16
          %s1054 = scalar_lea.vmem [#allocation4], %s1053
        $region152: #{odefunc_forward.1} parent=147 // pred_fallthru
          _
      $region148: #{odefunc_forward.1} parent=5 // pred_fallthru
        _
    $region6: #{odefunc_forward.1} parent=1 // loop_footer
      %s23 = sadd.s32 1, %s19
    $region7: #{odefunc_forward.1} parent=1 // loop_footer_branch
      %18 = sbr.rel target = $region3
    $region8: #{odefunc_forward.1} parent=1 // loop_exit
      _

</llo_original>
